<compile_context>
chip_gen: v7x
topology: tpu7x:2x2x1
jax: 0.10.0
libtpu: 0.0.40
codegen_flags: <defaults>
</compile_context>

<pallas_src>
import functools

import jax
import jax.numpy as jnp
from jax.experimental import pallas as pl
from jax.experimental.pallas import tpu as pltpu

LANES = 128
MAX_ROWS_PER_BLOCK = 2048      # 2048 x 128 x 4B = 1 MiB per operand per block


def _cdiv(a, b):
    return -(-a // b)


def _round_up(x, m):
    return ((x + m - 1) // m) * m


# --------------------------- fused Pallas kernels ---------------------------
def _error_kernel(bu_ref, td_ref, o_ref):
    d = bu_ref[...] - td_ref[...]
    # relu(d) + relu(-d)  ==  |bottom_up - top_down|
    o_ref[...] = jnp.maximum(d, 0.0) + jnp.maximum(-d, 0.0)


def _error_noise_kernel(bu_ref, td_ref, n_ref, o_ref):
    d = bu_ref[...] - td_ref[...]
    o_ref[...] = jnp.maximum(d, 0.0) + jnp.maximum(-d, 0.0) + n_ref[...]


# -------------------------------- wrapper -----------------------------------
def _to_lane_dense(x, rows_pp):
    """Flatten to 1D, zero-pad to rows_pp*128, reshape to (rows_pp, 128)."""
    flat = x.reshape(-1)
    pad = rows_pp * LANES - flat.shape[0]
    if pad:
        flat = jnp.pad(flat, (0, pad))
    return flat.reshape(rows_pp, LANES)


def error_unit_forward(bottom_up, top_down, out_full, noise_key=None,
                       freq_filter=False):
    """ErrorUnit.forward. Returns |bottom_up - top_down| viewed as (-1, *out_full)."""
    assert bottom_up.shape == top_down.shape
    if freq_filter:
        # TODO(synk): trutils.Gaussian_Smooth has no available definition, so the
        # freq_filter pre-smoothing path is not implemented.
        raise NotImplementedError("freq_filter (Gaussian_Smooth) not available")

    dtype = bottom_up.dtype
    total = bottom_up.size
    rows = _cdiv(total, LANES)
    rows_p = _round_up(rows, 8)                       # sublane alignment
    block_rows = min(MAX_ROWS_PER_BLOCK, rows_p)      # large, VMEM-safe tiles
    rows_pp = _round_up(rows_p, block_rows)
    grid = (rows_pp // block_rows,)

    inputs = [_to_lane_dense(bottom_up, rows_pp),
              _to_lane_dense(top_down, rows_pp)]
    kernel = _error_kernel
    if noise_key is not None:
        # PyTorch: noise.data.normal_(0, 0.01) -> fresh N(0, 0.01) noise added.
        noise = 0.01 * jax.random.normal(noise_key, bottom_up.shape,
                                         dtype=jnp.float32)
        inputs.append(_to_lane_dense(noise.astype(dtype), rows_pp))
        kernel = _error_noise_kernel

    blk = pl.BlockSpec((block_rows, LANES), lambda r: (r, 0))
    out2d = pl.pallas_call(
        kernel,
        out_shape=jax.ShapeDtypeStruct((rows_pp, LANES), dtype),
        grid_spec=pltpu.PrefetchScalarGridSpec(
            num_scalar_prefetch=0,
            grid=grid,
            in_specs=[blk] * len(inputs),
            out_specs=blk,
        ),
        compiler_params=pltpu.CompilerParams(
            dimension_semantics=("parallel",)),
    )(*inputs)

    out_flat = out2d.reshape(-1)
    if rows_pp * LANES != total:
        out_flat = out_flat[:total]
    return out_flat.reshape((-1,) + tuple(out_full))


# ---------------------------------- demo ------------------------------------
if __name__ == "__main__":
    key = jax.random.PRNGKey(0)
    out_full = (4, 16, 16)                       # p['ldim'][l]
    k1, k2 = jax.random.split(key)
    bottom_up = jax.random.normal(k1, (2,) + out_full, dtype=jnp.float32)
    top_down = jax.random.normal(k2, (2,) + out_full, dtype=jnp.float32)

    fwd = jax.jit(functools.partial(error_unit_forward, out_full=out_full))
    out = fwd(bottom_up, top_down)
    jax.block_until_ready(out)

    assert out.shape == (2,) + out_full, out.shape
    ref = jnp.abs(bottom_up - top_down).reshape((-1,) + out_full)
    assert bool(jnp.allclose(out, ref, atol=1e-6, rtol=1e-6))

    # optional fused-noise path (noise ~ N(0, 0.01) added in-kernel)
    out_noise = error_unit_forward(bottom_up, top_down, out_full,
                                   noise_key=jax.random.PRNGKey(1))
    jax.block_until_ready(out_noise)
    assert out_noise.shape == (2,) + out_full
    assert bool(jnp.all(jnp.isfinite(out_noise)))
    assert bool(jnp.max(jnp.abs(out_noise - ref)) < 0.2)   # small noise only

    print("KERNEL_OK")
</pallas_src>

<mosaic_0001>
module attributes {stable_mosaic.version = 11 : i64} {
  func.func @_error_kernel(%arg0: i32, %arg1: memref<16x128xf32, #tpu.memory_space<vmem>>, %arg2: memref<16x128xf32, #tpu.memory_space<vmem>>, %arg3: memref<16x128xf32, #tpu.memory_space<vmem>>) attributes {dimension_semantics = [#tpu.dimension_semantics<parallel>], iteration_bounds = array<i64: 1>, scalar_prefetch = 0 : i64, scratch_operands = 0 : i64, tpu.core_type = #tpu.core_type<tc>, window_params = [{transform_indices = @transform_0, window_bounds = array<i64: 16, 128>}, {transform_indices = @transform_1, window_bounds = array<i64: 16, 128>}, {transform_indices = @transform_2, window_bounds = array<i64: 16, 128>}]} {
    %c0 = arith.constant 0 : index
    %c0_0 = arith.constant 0 : index
    %0 = vector.load %arg1[%c0, %c0_0] : memref<16x128xf32, #tpu.memory_space<vmem>>, vector<16x128xf32>
    %c0_1 = arith.constant 0 : index
    %c0_2 = arith.constant 0 : index
    %1 = vector.load %arg2[%c0_1, %c0_2] : memref<16x128xf32, #tpu.memory_space<vmem>>, vector<16x128xf32>
    %2 = arith.subf %0, %1 : vector<16x128xf32>
    %cst = arith.constant 0.000000e+00 : f32
    %3 = vector.broadcast %cst : f32 to vector<16x128xf32>
    %4 = arith.maximumf %2, %3 : vector<16x128xf32>
    %cst_3 = arith.constant 0.000000e+00 : f32
    %5 = vector.broadcast %cst_3 : f32 to vector<16x128xf32>
    %6 = arith.subf %5, %2 : vector<16x128xf32>
    %cst_4 = arith.constant 0.000000e+00 : f32
    %7 = vector.broadcast %cst_4 : f32 to vector<16x128xf32>
    %8 = arith.maximumf %6, %7 : vector<16x128xf32>
    %9 = arith.addf %4, %8 : vector<16x128xf32>
    %c0_5 = arith.constant 0 : index
    %c0_6 = arith.constant 0 : index
    %10 = vector.load %arg3[%c0_5, %c0_6] : memref<16x128xf32, #tpu.memory_space<vmem>>, vector<16x128xf32>
    tpu.vector_store %arg3[%c0_5, %c0_6], %9 {strides = array<i32>} : memref<16x128xf32, #tpu.memory_space<vmem>>, vector<16x128xf32>,
    return
  }
  func.func @transform_0(%arg0: i32) -> (i32, i32) {
    %c0_i32 = arith.constant 0 : i32
    %c0_i32_0 = arith.constant 0 : i32
    return %arg0, %c0_i32 : i32, i32
  }
  func.func @transform_1(%arg0: i32) -> (i32, i32) {
    %c0_i32 = arith.constant 0 : i32
    %c0_i32_0 = arith.constant 0 : i32
    return %arg0, %c0_i32 : i32, i32
  }
  func.func @transform_2(%arg0: i32) -> (i32, i32) {
    %c0_i32 = arith.constant 0 : i32
    %c0_i32_0 = arith.constant 0 : i32
    return %arg0, %c0_i32 : i32, i32
  }
}

</mosaic_0001>

<llo_original>
// kernel: error_unit_forward.1
$region0: #{error_unit_forward.1}
  #allocation0 [shape = 'u32[]', space=smem, size = 0x4, offset = 0x4, fixed_abs, tag = 'smem constant byte address 0x4 - core index']
  #allocation1 [shape = 'u32[144,128]{1,0:T(1,128)}', space=vmem, size = 0x12000, scoped, tag = 'internal scratch']
  %s0 = inlined_call_operand.vmem [shape: f32[16,128], index: 0, kind: input, shape index: {}]
  %s1 = inlined_call_operand.vmem [shape: f32[16,128], index: 1, kind: input, shape index: {}]
  %s2 = inlined_call_operand.vmem [shape: f32[16,128], index: 2, kind: output, shape index: {}]
  %s3 = sld [smem:[#allocation0]]
  $region18: #{error_unit_forward.1} parent=0
    _
  %s5 = ssub.s32 1, %s3
  %s6 = scalar_select 0, %s5, %s3
  // Predicated region
  $region2: #{error_unit_forward.1} parent=0 // pred_check
    _
  $region3: #{error_unit_forward.1} parent=0 // pred_check_branch
    %8 = sbr.rel (0) target = $region5
  $region4: #{error_unit_forward.1} parent=0 // pred_region
    _
  $region5: #{error_unit_forward.1} parent=0 // pred_fallthru
    _
  // Predicated region
  $region6: #{error_unit_forward.1} parent=0 // pred_check
    _
  $region7: #{error_unit_forward.1} parent=0 // pred_check_branch
    %10 = sbr.rel (0) target = $region9
  $region8: #{error_unit_forward.1} parent=0 // pred_region
    _
  $region9: #{error_unit_forward.1} parent=0 // pred_fallthru
    _
  %v11 = vld [vmem:[%s0] sm:$0xff]
  %v12 = vld [vmem:[%s0 + $0x8] sm:$0xff]
  %v13 = vld [vmem:[%s1] sm:$0xff]
  %v14 = vld [vmem:[%s1 + $0x8] sm:$0xff]
  %v15 = vsub.f32 %v11, %v13
  %v16 = vsub.f32 %v12, %v14
  %v17 = vmax.f32 %v15, 0.0
  %v18 = vmax.f32 %v16, 0.0
  %v19 = vsub.f32 0.0, %v15
  %v20 = vsub.f32 0.0, %v16
  %v21 = vmax.f32 %v19, 0.0
  %v22 = vmax.f32 %v20, 0.0
  %v23 = vadd.f32 %v17, %v21
  %v24 = vadd.f32 %v18, %v22
  %25 = vst [vmem:[%s2] sm:$0xff] %v23
  %26 = vst [vmem:[%s2 + $0x8] sm:$0xff] %v24
  // Predicated region
  $region10: #{error_unit_forward.1} parent=0 // pred_check
    _
  $region11: #{error_unit_forward.1} parent=0 // pred_check_branch
    %28 = sbr.rel (0) target = $region13
  $region12: #{error_unit_forward.1} parent=0 // pred_region
    _
  $region13: #{error_unit_forward.1} parent=0 // pred_fallthru
    _
  // Predicated region
  $region14: #{error_unit_forward.1} parent=0 // pred_check
    _
  $region15: #{error_unit_forward.1} parent=0 // pred_check_branch
    %30 = sbr.rel (0) target = $region17
  $region16: #{error_unit_forward.1} parent=0 // pred_region
    _
  $region17: #{error_unit_forward.1} parent=0 // pred_fallthru
    _

</llo_original>
